<compile_context>
chip_gen: v5e
topology: v5e:2x2
jax: 0.10.0
libtpu: 0.0.40
codegen_flags: <defaults>
</compile_context>

<pallas_src>
import jax
import jax.numpy as jnp
from jax.experimental import pallas as pl
from jax.experimental.pallas import tpu as pltpu


def _round_up(x, m):
    return ((x + m - 1) // m) * m


# -----------------------------------------------------------------------------
# Kernel
# -----------------------------------------------------------------------------
def _vae_kernel(ma_ref,                                   # (1,) f32 in SMEM: max_action
                # batch-tiled activations
                state_ref, action_ref, mdp_ref, noise_ref,
                # encoder params (weights bf16, biases f32)
                w_es_ref, w_ea_ref, w_em_ref, be0_ref,
                we1_ref, be1_ref,
                whead_ref, bhead_ref,
                # decoder params
                w_ds_ref, w_dz_ref, w_dm_ref, bd0_ref,
                wd1_ref, bd1_ref, wdo_ref, bdo_ref,
                # outputs (lane-dense, padded to 128 lanes)
                u_ref, mean_ref, std_ref):
    f32 = jnp.float32
    bf16 = jnp.bfloat16

    def mm(x, w_ref):
        # bf16 MXU inputs, f32 accumulation; element-wise math stays f32.
        return jnp.dot(x.astype(bf16), w_ref[...], preferred_element_type=f32)

    max_action = ma_ref[0]
    state = state_ref[...]
    mdp = mdp_ref[...]

    # ---- encoder: relu(concat([state, action, mdp]) @ We0 + be0)  (virtual concat)
    h = (mm(state, w_es_ref) + mm(action_ref[...], w_ea_ref)
         + mm(mdp, w_em_ref) + be0_ref[...])
    h = jnp.maximum(h, 0.0)
    h = jnp.maximum(mm(h, we1_ref) + be1_ref[...], 0.0)                 # e_linears[0]

    # ---- fused mean|log_std head; each segment is padded to a 128-lane boundary,
    #      so the split below is a lane-aligned slice (no relayout).
    pad_l = mean_ref.shape[1]
    head = mm(h, whead_ref) + bhead_ref[...]                            # (bm, 2*pad_l)
    mean = head[:, :pad_l]                                              # padded lanes = 0
    log_std = jnp.clip(head[:, pad_l:], -4.0, 15.0)                     # padded lanes = 0
    std = jnp.exp(log_std)                                              # padded lanes = 1

    # ---- reparameterization (noise padded lanes are 0  =>  z padded lanes are 0)
    z = mean + std * noise_ref[...]

    # ---- decoder: relu(concat([state, z, mdp]) @ Wd0 + bd0)  (virtual concat)
    a = (mm(state, w_ds_ref) + mm(z, w_dz_ref)
         + mm(mdp, w_dm_ref) + bd0_ref[...])
    a = jnp.maximum(a, 0.0)
    a = jnp.maximum(mm(a, wd1_ref) + bd1_ref[...], 0.0)                 # d_linears[0]
    a = mm(a, wdo_ref) + bdo_ref[...]                                   # d_out, padded lanes = 0

    u_ref[...] = max_action * jnp.tanh(a)                               # padded lanes = 0
    mean_ref[...] = mean
    std_ref[...] = std


# -----------------------------------------------------------------------------
# Parameter preparation (one-time layout plumbing: split / fuse / pad / bf16-cast)
# -----------------------------------------------------------------------------
def prepare_kernel_params(p, state_dim, action_dim, enc_latent_dim, vae_latent_dim,
                          weight_dtype=jnp.bfloat16):
    """Convert PyTorch-layout params (W as (in, out), b as (1, out)) to kernel layout."""
    L, A = vae_latent_dim, action_dim
    pad_l = _round_up(L, 128)
    pad_a = _round_up(A, 128)
    wd, f32 = weight_dtype, jnp.float32

    # encoder input layer: row split for the "virtual concat"
    s0, s1 = state_dim, state_dim + action_dim
    w_es = p["we0"][:s0].astype(wd)
    w_ea = p["we0"][s0:s1].astype(wd)
    w_em = p["we0"][s1:].astype(wd)

    # fused mean|log_std head; each segment lane-padded to 128.
    k = p["wmean"].shape[0]
    whead = jnp.zeros((k, 2 * pad_l), f32)
    whead = whead.at[:, :L].set(p["wmean"]).at[:, pad_l:pad_l + L].set(p["wls"]).astype(wd)
    bhead = jnp.zeros((1, 2 * pad_l), f32)
    bhead = bhead.at[:, :L].set(p["bmean"].reshape(1, L)).at[:, pad_l:pad_l + L].set(
        p["bls"].reshape(1, L))

    # decoder input layer: row split; z block padded to pad_l rows (z is lane-padded).
    d0 = p["wd0"].shape[1]
    w_ds = p["wd0"][:state_dim].astype(wd)
    w_dz = jnp.zeros((pad_l, d0), f32).at[:L].set(
        p["wd0"][state_dim:state_dim + L]).astype(wd)
    w_dm = p["wd0"][state_dim + L:].astype(wd)

    # decoder output layer padded to 128 lanes -> dense final store.
    d1 = p["wdo"].shape[0]
    wdo = jnp.zeros((d1, pad_a), f32).at[:, :A].set(p["wdo"]).astype(wd)
    bdo = jnp.zeros((1, pad_a), f32).at[:, :A].set(p["bdo"].reshape(1, A))

    # NOTE: hidden-layer biases stay (1, hidden); with hidden=32 these are masked
    # (sub-128-lane) loads but negligible.  When scaling up, choose hidden sizes
    # that are multiples of 128 (v5e) / 256 (v6e/v7x) for MXU occupancy.
    return [
        w_es, w_ea, w_em, p["be0"].reshape(1, -1).astype(f32),
        p["we1"].astype(wd), p["be1"].reshape(1, -1).astype(f32),
        whead, bhead,
        w_ds, w_dz, w_dm, p["bd0"].reshape(1, -1).astype(f32),
        p["wd1"].astype(wd), p["bd1"].reshape(1, -1).astype(f32),
        wdo, bdo,
    ]


# -----------------------------------------------------------------------------
# Forward wrapper
# -----------------------------------------------------------------------------
def _pick_bm(B, bm=None):
    if bm is None:
        if B <= 128:
            bm = B           # one grid step: at tiny batch the per-step tax dominates
        elif B % 128 == 0:
            bm = 128         # >=128 MXU rows/step; >=2 "parallel" steps keeps both v7x TCs busy
        else:
            bm = B
    assert B % bm == 0 and (bm == B or bm % 8 == 0)
    return bm


def vae_forward_pallas(state, action, inferred_mdp, noise, kernel_params, max_action,
                       bm=None):
    B, state_dim = state.shape
    action_dim = action.shape[1]
    mdp_dim = inferred_mdp.shape[1]
    latent_dim = noise.shape[1]
    pad_l = _round_up(latent_dim, 128)
    pad_a = _round_up(action_dim, 128)
    bm = _pick_bm(B, bm)

    # lane-pad the noise so z stays lane-dense inside the kernel
    noise_pad = jnp.zeros((B, pad_l), jnp.float32).at[:, :latent_dim].set(noise)

    # runtime scalar in SMEM -> changing max_action does not recompile the kernel
    ma = jnp.full((1,), max_action, jnp.float32)

    def batch_spec(d):
        return pl.BlockSpec((bm, d), lambda i: (i, 0))

    def full_spec(arr):
        # Grid-invariant weights/biases: whole array resident in VMEM.
        # TODO(synk): add pipeline_mode=pl.Buffered(1) here when hidden sizes scale up,
        # to drop the redundant double buffer on grid-invariant operands (v7x 64 MiB VMEM).
        return pl.BlockSpec(arr.shape, lambda i: (0, 0))

    in_specs = ([pl.BlockSpec(memory_space=pltpu.MemorySpace.SMEM)]
                + [batch_spec(state_dim), batch_spec(action_dim),
                   batch_spec(mdp_dim), batch_spec(pad_l)]
                + [full_spec(w) for w in kernel_params])

    out_specs = [batch_spec(pad_a), batch_spec(pad_l), batch_spec(pad_l)]
    out_shape = [jax.ShapeDtypeStruct((B, pad_a), jnp.float32),
                 jax.ShapeDtypeStruct((B, pad_l), jnp.float32),
                 jax.ShapeDtypeStruct((B, pad_l), jnp.float32)]

    # Advisory cost estimate so XLA schedules around this small custom call.
    h0 = kernel_params[0].shape[1]
    h1 = kernel_params[4].shape[1]
    d0 = kernel_params[8].shape[1]
    d1 = kernel_params[12].shape[1]
    flops = 2 * B * ((state_dim + action_dim + mdp_dim) * h0
                     + h0 * h1
                     + h1 * (2 * pad_l)
                     + (state_dim + pad_l + mdp_dim) * d0
                     + d0 * d1
                     + d1 * pad_a)
    bytes_accessed = (sum(int(x.size) * x.dtype.itemsize
                          for x in (state, action, inferred_mdp, noise_pad))
                      + sum(int(w.size) * w.dtype.itemsize for w in kernel_params)
                      + B * (pad_a + 2 * pad_l) * 4)
    cost = pl.CostEstimate(flops=flops,
                           transcendentals=B * (pad_l + pad_a),
                           bytes_accessed=bytes_accessed)

    u_pad, mean_pad, std_pad = pl.pallas_call(
        _vae_kernel,
        out_shape=out_shape,
        grid_spec=pltpu.PrefetchScalarGridSpec(
            num_scalar_prefetch=0,
            grid=(B // bm,),
            in_specs=in_specs,
            out_specs=out_specs,
        ),
        compiler_params=pltpu.CompilerParams(dimension_semantics=("parallel",)),
        cost_estimate=cost,
    )(ma, state, action, inferred_mdp, noise_pad, *kernel_params)

    return (u_pad[:, :action_dim], mean_pad[:, :latent_dim], std_pad[:, :latent_dim])


# -----------------------------------------------------------------------------
# Pure-JAX reference (mirrors the PyTorch forward)
# -----------------------------------------------------------------------------
def vae_forward_ref(state, action, inferred_mdp, noise, p, max_action,
                    matmul_dtype=jnp.float32):
    """matmul_dtype=bfloat16 reproduces the kernel's MXU input precision
    (accumulation stays f32); float32 is the exact PyTorch-semantics reference."""
    def lin(x, w, b):
        return jnp.dot(x.astype(matmul_dtype), w.astype(matmul_dtype),
                       preferred_element_type=jnp.float32) + b

    x = jnp.concatenate([state, action, inferred_mdp], axis=1)
    h = jax.nn.relu(lin(x, p["we0"], p["be0"]))
    h = jax.nn.relu(lin(h, p["we1"], p["be1"]))
    mean = lin(h, p["wmean"], p["bmean"])
    log_std = jnp.clip(lin(h, p["wls"], p["bls"]), -4.0, 15.0)
    std = jnp.exp(log_std)
    z = mean + std * noise
    xd = jnp.concatenate([state, z, inferred_mdp], axis=1)
    a = jax.nn.relu(lin(xd, p["wd0"], p["bd0"]))
    a = jax.nn.relu(lin(a, p["wd1"], p["bd1"]))
    a = lin(a, p["wdo"], p["bdo"])
    return max_action * jnp.tanh(a), mean, std


# -----------------------------------------------------------------------------
# Deterministic synthetic parameters (PyTorch layout: W (in,out), b (1,out))
# -----------------------------------------------------------------------------
def init_params(key, state_dim, action_dim, enc_latent_dim, vae_latent_dim,
                e_hid_sizes, d_hid_sizes):
    assert len(e_hid_sizes) == 2 and len(d_hid_sizes) == 2, \
        "kernel is specialized to two hidden layers per stack (as in the demo config)"
    p = {}
    keys = iter(jax.random.split(key, 32))

    def lin_init(in_d, out_d):
        w = jax.random.normal(next(keys), (in_d, out_d), jnp.float32) * 0.2
        b = jax.random.normal(next(keys), (1, out_d), jnp.float32) * 0.1
        return w, b

    e_in = state_dim + action_dim + enc_latent_dim
    p["we0"], p["be0"] = lin_init(e_in, e_hid_sizes[0])
    p["we1"], p["be1"] = lin_init(e_hid_sizes[0], e_hid_sizes[1])
    p["wmean"], p["bmean"] = lin_init(e_hid_sizes[-1], vae_latent_dim)
    p["wls"], p["bls"] = lin_init(e_hid_sizes[-1], vae_latent_dim)
    d_in = state_dim + vae_latent_dim + enc_latent_dim
    p["wd0"], p["bd0"] = lin_init(d_in, d_hid_sizes[0])
    p["wd1"], p["bd1"] = lin_init(d_hid_sizes[0], d_hid_sizes[1])
    p["wdo"], p["bdo"] = lin_init(d_hid_sizes[-1], action_dim)
    return p


if __name__ == "__main__":
    batch = 16
    state_dim, action_dim = 8, 4
    encoder_latent_dim, vae_latent_dim = 4, 8
    e_hid_sizes = [32, 32]
    d_hid_sizes = [32, 32]
    max_action = 2.0

    key = jax.random.PRNGKey(0)
    k_s, k_a, k_m, k_n, k_p = jax.random.split(key, 5)
    state = jax.random.normal(k_s, (batch, state_dim), jnp.float32)
    action = jax.random.normal(k_a, (batch, action_dim), jnp.float32)
    inferred_mdp = jax.random.normal(k_m, (batch, encoder_latent_dim), jnp.float32)
    noise = jax.random.normal(k_n, (batch, vae_latent_dim), jnp.float32)

    params = init_params(k_p, state_dim, action_dim, encoder_latent_dim,
                         vae_latent_dim, e_hid_sizes, d_hid_sizes)
    kparams = prepare_kernel_params(params, state_dim, action_dim,
                                    encoder_latent_dim, vae_latent_dim)

    u, mean, std = vae_forward_pallas(state, action, inferred_mdp, noise,
                                      kparams, max_action)
    jax.block_until_ready((u, mean, std))

    # Tight check against a reference with the same matmul precision as the kernel.
    u_b, mean_b, std_b = vae_forward_ref(state, action, inferred_mdp, noise,
                                         params, max_action,
                                         matmul_dtype=jnp.bfloat16)
    assert jnp.allclose(u, u_b, atol=5e-3, rtol=5e-3), "u mismatch (bf16-matmul ref)"
    assert jnp.allclose(mean, mean_b, atol=5e-3, rtol=5e-3), "mean mismatch (bf16-matmul ref)"
    assert jnp.allclose(std, std_b, atol=5e-3, rtol=5e-3), "std mismatch (bf16-matmul ref)"

    # Looser check against the exact f32 PyTorch-semantics reference (bf16 rounding).
    u_r, mean_r, std_r = vae_forward_ref(state, action, inferred_mdp, noise,
                                         params, max_action)
    assert jnp.allclose(u, u_r, atol=5e-2, rtol=5e-2), "u mismatch (f32 ref)"
    assert jnp.allclose(mean, mean_r, atol=5e-2, rtol=5e-2), "mean mismatch (f32 ref)"
    assert jnp.allclose(std, std_r, atol=5e-2, rtol=5e-2), "std mismatch (f32 ref)"

    print("KERNEL_OK")
</pallas_src>

<mosaic_0001>
module attributes {stable_mosaic.version = 11 : i64} {
  func.func @_vae_kernel(%arg0: i32, %arg1: memref<1xf32, #tpu.memory_space<smem>>, %arg2: memref<16x8xf32, #tpu.memory_space<vmem>>, %arg3: memref<16x4xf32, #tpu.memory_space<vmem>>, %arg4: memref<16x4xf32, #tpu.memory_space<vmem>>, %arg5: memref<16x128xf32, #tpu.memory_space<vmem>>, %arg6: memref<8x32xbf16, #tpu.memory_space<vmem>>, %arg7: memref<4x32xbf16, #tpu.memory_space<vmem>>, %arg8: memref<4x32xbf16, #tpu.memory_space<vmem>>, %arg9: memref<1x32xf32, #tpu.memory_space<vmem>>, %arg10: memref<32x32xbf16, #tpu.memory_space<vmem>>, %arg11: memref<1x32xf32, #tpu.memory_space<vmem>>, %arg12: memref<32x256xbf16, #tpu.memory_space<vmem>>, %arg13: memref<1x256xf32, #tpu.memory_space<vmem>>, %arg14: memref<8x32xbf16, #tpu.memory_space<vmem>>, %arg15: memref<128x32xbf16, #tpu.memory_space<vmem>>, %arg16: memref<4x32xbf16, #tpu.memory_space<vmem>>, %arg17: memref<1x32xf32, #tpu.memory_space<vmem>>, %arg18: memref<32x32xbf16, #tpu.memory_space<vmem>>, %arg19: memref<1x32xf32, #tpu.memory_space<vmem>>, %arg20: memref<32x128xbf16, #tpu.memory_space<vmem>>, %arg21: memref<1x128xf32, #tpu.memory_space<vmem>>, %arg22: memref<16x128xf32, #tpu.memory_space<vmem>>, %arg23: memref<16x128xf32, #tpu.memory_space<vmem>>, %arg24: memref<16x128xf32, #tpu.memory_space<vmem>>) attributes {dimension_semantics = [#tpu.dimension_semantics<parallel>], iteration_bounds = array<i64: 1>, scalar_prefetch = 0 : i64, scratch_operands = 0 : i64, tpu.core_type = #tpu.core_type<tc>, window_params = [{transform_indices = @transform_0, window_bounds = array<i64: 1>}, {transform_indices = @transform_1, window_bounds = array<i64: 16, 8>}, {transform_indices = @transform_2, window_bounds = array<i64: 16, 4>}, {transform_indices = @transform_3, window_bounds = array<i64: 16, 4>}, {transform_indices = @transform_4, window_bounds = array<i64: 16, 128>}, {pipeline_mode = #tpu.pipeline_mode<synchronous>, transform_indices = @transform_5, window_bounds = array<i64: 8, 32>}, {pipeline_mode = #tpu.pipeline_mode<synchronous>, transform_indices = @transform_6, window_bounds = array<i64: 4, 32>}, {pipeline_mode = #tpu.pipeline_mode<synchronous>, transform_indices = @transform_7, window_bounds = array<i64: 4, 32>}, {pipeline_mode = #tpu.pipeline_mode<synchronous>, transform_indices = @transform_8, window_bounds = array<i64: 1, 32>}, {pipeline_mode = #tpu.pipeline_mode<synchronous>, transform_indices = @transform_9, window_bounds = array<i64: 32, 32>}, {pipeline_mode = #tpu.pipeline_mode<synchronous>, transform_indices = @transform_10, window_bounds = array<i64: 1, 32>}, {pipeline_mode = #tpu.pipeline_mode<synchronous>, transform_indices = @transform_11, window_bounds = array<i64: 32, 256>}, {pipeline_mode = #tpu.pipeline_mode<synchronous>, transform_indices = @transform_12, window_bounds = array<i64: 1, 256>}, {pipeline_mode = #tpu.pipeline_mode<synchronous>, transform_indices = @transform_13, window_bounds = array<i64: 8, 32>}, {pipeline_mode = #tpu.pipeline_mode<synchronous>, transform_indices = @transform_14, window_bounds = array<i64: 128, 32>}, {pipeline_mode = #tpu.pipeline_mode<synchronous>, transform_indices = @transform_15, window_bounds = array<i64: 4, 32>}, {pipeline_mode = #tpu.pipeline_mode<synchronous>, transform_indices = @transform_16, window_bounds = array<i64: 1, 32>}, {pipeline_mode = #tpu.pipeline_mode<synchronous>, transform_indices = @transform_17, window_bounds = array<i64: 32, 32>}, {pipeline_mode = #tpu.pipeline_mode<synchronous>, transform_indices = @transform_18, window_bounds = array<i64: 1, 32>}, {pipeline_mode = #tpu.pipeline_mode<synchronous>, transform_indices = @transform_19, window_bounds = array<i64: 32, 128>}, {pipeline_mode = #tpu.pipeline_mode<synchronous>, transform_indices = @transform_20, window_bounds = array<i64: 1, 128>}, {transform_indices = @transform_21, window_bounds = array<i64: 16, 128>}, {transform_indices = @transform_22, window_bounds = array<i64: 16, 128>}, {transform_indices = @transform_23, window_bounds = array<i64: 16, 128>}]} {
    %c0 = arith.constant 0 : index
    %0 = memref.load %arg1[%c0] : memref<1xf32, #tpu.memory_space<smem>>
    %c0_0 = arith.constant 0 : index
    %c0_1 = arith.constant 0 : index
    %1 = vector.load %arg2[%c0_0, %c0_1] : memref<16x8xf32, #tpu.memory_space<vmem>>, vector<16x8xf32>
    %c0_2 = arith.constant 0 : index
    %c0_3 = arith.constant 0 : index
    %2 = vector.load %arg4[%c0_2, %c0_3] : memref<16x4xf32, #tpu.memory_space<vmem>>, vector<16x4xf32>
    %3 = arith.truncf %1 : vector<16x8xf32> to vector<16x8xbf16>
    %c0_4 = arith.constant 0 : index
    %c0_5 = arith.constant 0 : index
    %4 = vector.load %arg6[%c0_4, %c0_5] : memref<8x32xbf16, #tpu.memory_space<vmem>>, vector<8x32xbf16>
    %cst = arith.constant dense<0.000000e+00> : vector<16x32xf32>
    %5 = tpu.matmul %3, %4, %cst {dimension_numbers = #tpu.dot_dimension_numbers<[1], [0], [0], [1], [0, 0, 1, 1], [], []>} : vector<16x8xbf16>, vector<8x32xbf16>, vector<16x32xf32> -> vector<16x32xf32>
    %c0_6 = arith.constant 0 : index
    %c0_7 = arith.constant 0 : index
    %6 = vector.load %arg3[%c0_6, %c0_7] : memref<16x4xf32, #tpu.memory_space<vmem>>, vector<16x4xf32>
    %7 = arith.truncf %6 : vector<16x4xf32> to vector<16x4xbf16>
    %c0_8 = arith.constant 0 : index
    %c0_9 = arith.constant 0 : index
    %8 = vector.load %arg7[%c0_8, %c0_9] : memref<4x32xbf16, #tpu.memory_space<vmem>>, vector<4x32xbf16>
    %cst_10 = arith.constant dense<0.000000e+00> : vector<16x32xf32>
    %9 = tpu.matmul %7, %8, %cst_10 {dimension_numbers = #tpu.dot_dimension_numbers<[1], [0], [0], [1], [0, 0, 1, 1], [], []>} : vector<16x4xbf16>, vector<4x32xbf16>, vector<16x32xf32> -> vector<16x32xf32>
    %10 = arith.addf %5, %9 : vector<16x32xf32>
    %11 = arith.truncf %2 : vector<16x4xf32> to vector<16x4xbf16>
    %c0_11 = arith.constant 0 : index
    %c0_12 = arith.constant 0 : index
    %12 = vector.load %arg8[%c0_11, %c0_12] : memref<4x32xbf16, #tpu.memory_space<vmem>>, vector<4x32xbf16>
    %cst_13 = arith.constant dense<0.000000e+00> : vector<16x32xf32>
    %13 = tpu.matmul %11, %12, %cst_13 {dimension_numbers = #tpu.dot_dimension_numbers<[1], [0], [0], [1], [0, 0, 1, 1], [], []>} : vector<16x4xbf16>, vector<4x32xbf16>, vector<16x32xf32> -> vector<16x32xf32>
    %14 = arith.addf %10, %13 : vector<16x32xf32>
    %c0_14 = arith.constant 0 : index
    %c0_15 = arith.constant 0 : index
    %15 = vector.load %arg9[%c0_14, %c0_15] : memref<1x32xf32, #tpu.memory_space<vmem>>, vector<1x32xf32>
    %16 = vector.broadcast %15 : vector<1x32xf32> to vector<16x32xf32>
    %17 = arith.addf %14, %16 : vector<16x32xf32>
    %cst_16 = arith.constant 0.000000e+00 : f32
    %18 = vector.broadcast %cst_16 : f32 to vector<16x32xf32>
    %19 = arith.maximumf %17, %18 : vector<16x32xf32>
    %20 = arith.truncf %19 : vector<16x32xf32> to vector<16x32xbf16>
    %c0_17 = arith.constant 0 : index
    %c0_18 = arith.constant 0 : index
    %21 = vector.load %arg10[%c0_17, %c0_18] : memref<32x32xbf16, #tpu.memory_space<vmem>>, vector<32x32xbf16>
    %cst_19 = arith.constant dense<0.000000e+00> : vector<16x32xf32>
    %22 = tpu.matmul %20, %21, %cst_19 {dimension_numbers = #tpu.dot_dimension_numbers<[1], [0], [0], [1], [0, 0, 1, 1], [], []>} : vector<16x32xbf16>, vector<32x32xbf16>, vector<16x32xf32> -> vector<16x32xf32>
    %c0_20 = arith.constant 0 : index
    %c0_21 = arith.constant 0 : index
    %23 = vector.load %arg11[%c0_20, %c0_21] : memref<1x32xf32, #tpu.memory_space<vmem>>, vector<1x32xf32>
    %24 = vector.broadcast %23 : vector<1x32xf32> to vector<16x32xf32>
    %25 = arith.addf %22, %24 : vector<16x32xf32>
    %cst_22 = arith.constant 0.000000e+00 : f32
    %26 = vector.broadcast %cst_22 : f32 to vector<16x32xf32>
    %27 = arith.maximumf %25, %26 : vector<16x32xf32>
    %28 = arith.truncf %27 : vector<16x32xf32> to vector<16x32xbf16>
    %c0_23 = arith.constant 0 : index
    %c0_24 = arith.constant 0 : index
    %29 = vector.load %arg12[%c0_23, %c0_24] : memref<32x256xbf16, #tpu.memory_space<vmem>>, vector<32x256xbf16>
    %cst_25 = arith.constant dense<0.000000e+00> : vector<16x256xf32>
    %30 = tpu.matmul %28, %29, %cst_25 {dimension_numbers = #tpu.dot_dimension_numbers<[1], [0], [0], [1], [0, 0, 1, 1], [], []>} : vector<16x32xbf16>, vector<32x256xbf16>, vector<16x256xf32> -> vector<16x256xf32>
    %c0_26 = arith.constant 0 : index
    %c0_27 = arith.constant 0 : index
    %31 = vector.load %arg13[%c0_26, %c0_27] : memref<1x256xf32, #tpu.memory_space<vmem>>, vector<1x256xf32>
    %32 = vector.broadcast %31 : vector<1x256xf32> to vector<16x256xf32>
    %33 = arith.addf %30, %32 : vector<16x256xf32>
    %34 = vector.extract_strided_slice %33 {offsets = [0, 0], sizes = [16, 128], strides = [1, 1]} : vector<16x256xf32> to vector<16x128xf32>
    %35 = vector.extract_strided_slice %33 {offsets = [0, 128], sizes = [16, 128], strides = [1, 1]} : vector<16x256xf32> to vector<16x128xf32>
    %cst_28 = arith.constant -4.000000e+00 : f32
    %cst_29 = arith.constant 1.500000e+01 : f32
    %36 = vector.broadcast %cst_28 : f32 to vector<16x128xf32>
    %37 = arith.maximumf %36, %35 : vector<16x128xf32>
    %38 = vector.broadcast %cst_29 : f32 to vector<16x128xf32>
    %39 = arith.minimumf %38, %37 : vector<16x128xf32>
    %40 = math.exp %39 : vector<16x128xf32>
    %c0_30 = arith.constant 0 : index
    %c0_31 = arith.constant 0 : index
    %41 = vector.load %arg5[%c0_30, %c0_31] : memref<16x128xf32, #tpu.memory_space<vmem>>, vector<16x128xf32>
    %42 = arith.mulf %40, %41 : vector<16x128xf32>
    %43 = arith.addf %34, %42 : vector<16x128xf32>
    %44 = arith.truncf %1 : vector<16x8xf32> to vector<16x8xbf16>
    %c0_32 = arith.constant 0 : index
    %c0_33 = arith.constant 0 : index
    %45 = vector.load %arg14[%c0_32, %c0_33] : memref<8x32xbf16, #tpu.memory_space<vmem>>, vector<8x32xbf16>
    %cst_34 = arith.constant dense<0.000000e+00> : vector<16x32xf32>
    %46 = tpu.matmul %44, %45, %cst_34 {dimension_numbers = #tpu.dot_dimension_numbers<[1], [0], [0], [1], [0, 0, 1, 1], [], []>} : vector<16x8xbf16>, vector<8x32xbf16>, vector<16x32xf32> -> vector<16x32xf32>
    %47 = arith.truncf %43 : vector<16x128xf32> to vector<16x128xbf16>
    %c0_35 = arith.constant 0 : index
    %c0_36 = arith.constant 0 : index
    %48 = vector.load %arg15[%c0_35, %c0_36] : memref<128x32xbf16, #tpu.memory_space<vmem>>, vector<128x32xbf16>
    %cst_37 = arith.constant dense<0.000000e+00> : vector<16x32xf32>
    %49 = tpu.matmul %47, %48, %cst_37 {dimension_numbers = #tpu.dot_dimension_numbers<[1], [0], [0], [1], [0, 0, 1, 1], [], []>} : vector<16x128xbf16>, vector<128x32xbf16>, vector<16x32xf32> -> vector<16x32xf32>
    %50 = arith.addf %46, %49 : vector<16x32xf32>
    %51 = arith.truncf %2 : vector<16x4xf32> to vector<16x4xbf16>
    %c0_38 = arith.constant 0 : index
    %c0_39 = arith.constant 0 : index
    %52 = vector.load %arg16[%c0_38, %c0_39] : memref<4x32xbf16, #tpu.memory_space<vmem>>, vector<4x32xbf16>
    %cst_40 = arith.constant dense<0.000000e+00> : vector<16x32xf32>
    %53 = tpu.matmul %51, %52, %cst_40 {dimension_numbers = #tpu.dot_dimension_numbers<[1], [0], [0], [1], [0, 0, 1, 1], [], []>} : vector<16x4xbf16>, vector<4x32xbf16>, vector<16x32xf32> -> vector<16x32xf32>
    %54 = arith.addf %50, %53 : vector<16x32xf32>
    %c0_41 = arith.constant 0 : index
    %c0_42 = arith.constant 0 : index
    %55 = vector.load %arg17[%c0_41, %c0_42] : memref<1x32xf32, #tpu.memory_space<vmem>>, vector<1x32xf32>
    %56 = vector.broadcast %55 : vector<1x32xf32> to vector<16x32xf32>
    %57 = arith.addf %54, %56 : vector<16x32xf32>
    %cst_43 = arith.constant 0.000000e+00 : f32
    %58 = vector.broadcast %cst_43 : f32 to vector<16x32xf32>
    %59 = arith.maximumf %57, %58 : vector<16x32xf32>
    %60 = arith.truncf %59 : vector<16x32xf32> to vector<16x32xbf16>
    %c0_44 = arith.constant 0 : index
    %c0_45 = arith.constant 0 : index
    %61 = vector.load %arg18[%c0_44, %c0_45] : memref<32x32xbf16, #tpu.memory_space<vmem>>, vector<32x32xbf16>
    %cst_46 = arith.constant dense<0.000000e+00> : vector<16x32xf32>
    %62 = tpu.matmul %60, %61, %cst_46 {dimension_numbers = #tpu.dot_dimension_numbers<[1], [0], [0], [1], [0, 0, 1, 1], [], []>} : vector<16x32xbf16>, vector<32x32xbf16>, vector<16x32xf32> -> vector<16x32xf32>
    %c0_47 = arith.constant 0 : index
    %c0_48 = arith.constant 0 : index
    %63 = vector.load %arg19[%c0_47, %c0_48] : memref<1x32xf32, #tpu.memory_space<vmem>>, vector<1x32xf32>
    %64 = vector.broadcast %63 : vector<1x32xf32> to vector<16x32xf32>
    %65 = arith.addf %62, %64 : vector<16x32xf32>
    %cst_49 = arith.constant 0.000000e+00 : f32
    %66 = vector.broadcast %cst_49 : f32 to vector<16x32xf32>
    %67 = arith.maximumf %65, %66 : vector<16x32xf32>
    %68 = arith.truncf %67 : vector<16x32xf32> to vector<16x32xbf16>
    %c0_50 = arith.constant 0 : index
    %c0_51 = arith.constant 0 : index
    %69 = vector.load %arg20[%c0_50, %c0_51] : memref<32x128xbf16, #tpu.memory_space<vmem>>, vector<32x128xbf16>
    %cst_52 = arith.constant dense<0.000000e+00> : vector<16x128xf32>
    %70 = tpu.matmul %68, %69, %cst_52 {dimension_numbers = #tpu.dot_dimension_numbers<[1], [0], [0], [1], [0, 0, 1, 1], [], []>} : vector<16x32xbf16>, vector<32x128xbf16>, vector<16x128xf32> -> vector<16x128xf32>
    %c0_53 = arith.constant 0 : index
    %c0_54 = arith.constant 0 : index
    %71 = vector.load %arg21[%c0_53, %c0_54] : memref<1x128xf32, #tpu.memory_space<vmem>>, vector<1x128xf32>
    %72 = vector.broadcast %71 : vector<1x128xf32> to vector<16x128xf32>
    %73 = arith.addf %70, %72 : vector<16x128xf32>
    %74 = math.tanh %73 : vector<16x128xf32>
    %75 = vector.broadcast %0 : f32 to vector<16x128xf32>
    %76 = arith.mulf %75, %74 : vector<16x128xf32>
    %c0_55 = arith.constant 0 : index
    %c0_56 = arith.constant 0 : index
    %77 = vector.load %arg22[%c0_55, %c0_56] : memref<16x128xf32, #tpu.memory_space<vmem>>, vector<16x128xf32>
    tpu.vector_store %arg22[%c0_55, %c0_56], %76 {strides = array<i32>} : memref<16x128xf32, #tpu.memory_space<vmem>>, vector<16x128xf32>,
    %c0_57 = arith.constant 0 : index
    %c0_58 = arith.constant 0 : index
    %78 = vector.load %arg23[%c0_57, %c0_58] : memref<16x128xf32, #tpu.memory_space<vmem>>, vector<16x128xf32>
    tpu.vector_store %arg23[%c0_57, %c0_58], %34 {strides = array<i32>} : memref<16x128xf32, #tpu.memory_space<vmem>>, vector<16x128xf32>,
    %c0_59 = arith.constant 0 : index
    %c0_60 = arith.constant 0 : index
    %79 = vector.load %arg24[%c0_59, %c0_60] : memref<16x128xf32, #tpu.memory_space<vmem>>, vector<16x128xf32>
    tpu.vector_store %arg24[%c0_59, %c0_60], %40 {strides = array<i32>} : memref<16x128xf32, #tpu.memory_space<vmem>>, vector<16x128xf32>,
    return
  }
  func.func @transform_0(%arg0: i32) -> i32 {
    %c0_i32 = arith.constant 0 : i32
    %c0_i32_0 = arith.constant 0 : i32
    return %c0_i32 : i32
  }
  func.func @transform_1(%arg0: i32) -> (i32, i32) {
    %c0_i32 = arith.constant 0 : i32
    %c0_i32_0 = arith.constant 0 : i32
    return %arg0, %c0_i32 : i32, i32
  }
  func.func @transform_2(%arg0: i32) -> (i32, i32) {
    %c0_i32 = arith.constant 0 : i32
    %c0_i32_0 = arith.constant 0 : i32
    return %arg0, %c0_i32 : i32, i32
  }
  func.func @transform_3(%arg0: i32) -> (i32, i32) {
    %c0_i32 = arith.constant 0 : i32
    %c0_i32_0 = arith.constant 0 : i32
    return %arg0, %c0_i32 : i32, i32
  }
  func.func @transform_4(%arg0: i32) -> (i32, i32) {
    %c0_i32 = arith.constant 0 : i32
    %c0_i32_0 = arith.constant 0 : i32
    return %arg0, %c0_i32 : i32, i32
  }
  func.func @transform_5(%arg0: i32) -> (i32, i32) {
    %c0_i32 = arith.constant 0 : i32
    %c0_i32_0 = arith.constant 0 : i32
    %c0_i32_1 = arith.constant 0 : i32
    return %c0_i32, %c0_i32_0 : i32, i32
  }
  func.func @transform_6(%arg0: i32) -> (i32, i32) {
    %c0_i32 = arith.constant 0 : i32
    %c0_i32_0 = arith.constant 0 : i32
    %c0_i32_1 = arith.constant 0 : i32
    return %c0_i32, %c0_i32_0 : i32, i32
  }
  func.func @transform_7(%arg0: i32) -> (i32, i32) {
    %c0_i32 = arith.constant 0 : i32
    %c0_i32_0 = arith.constant 0 : i32
    %c0_i32_1 = arith.constant 0 : i32
    return %c0_i32, %c0_i32_0 : i32, i32
  }
  func.func @transform_8(%arg0: i32) -> (i32, i32) {
    %c0_i32 = arith.constant 0 : i32
    %c0_i32_0 = arith.constant 0 : i32
    %c0_i32_1 = arith.constant 0 : i32
    return %c0_i32, %c0_i32_0 : i32, i32
  }
  func.func @transform_9(%arg0: i32) -> (i32, i32) {
    %c0_i32 = arith.constant 0 : i32
    %c0_i32_0 = arith.constant 0 : i32
    %c0_i32_1 = arith.constant 0 : i32
    return %c0_i32, %c0_i32_0 : i32, i32
  }
  func.func @transform_10(%arg0: i32) -> (i32, i32) {
    %c0_i32 = arith.constant 0 : i32
    %c0_i32_0 = arith.constant 0 : i32
    %c0_i32_1 = arith.constant 0 : i32
    return %c0_i32, %c0_i32_0 : i32, i32
  }
  func.func @transform_11(%arg0: i32) -> (i32, i32) {
    %c0_i32 = arith.constant 0 : i32
    %c0_i32_0 = arith.constant 0 : i32
    %c0_i32_1 = arith.constant 0 : i32
    return %c0_i32, %c0_i32_0 : i32, i32
  }
  func.func @transform_12(%arg0: i32) -> (i32, i32) {
    %c0_i32 = arith.constant 0 : i32
    %c0_i32_0 = arith.constant 0 : i32
    %c0_i32_1 = arith.constant 0 : i32
    return %c0_i32, %c0_i32_0 : i32, i32
  }
  func.func @transform_13(%arg0: i32) -> (i32, i32) {
    %c0_i32 = arith.constant 0 : i32
    %c0_i32_0 = arith.constant 0 : i32
    %c0_i32_1 = arith.constant 0 : i32
    return %c0_i32, %c0_i32_0 : i32, i32
  }
  func.func @transform_14(%arg0: i32) -> (i32, i32) {
    %c0_i32 = arith.constant 0 : i32
    %c0_i32_0 = arith.constant 0 : i32
    %c0_i32_1 = arith.constant 0 : i32
    return %c0_i32, %c0_i32_0 : i32, i32
  }
  func.func @transform_15(%arg0: i32) -> (i32, i32) {
    %c0_i32 = arith.constant 0 : i32
    %c0_i32_0 = arith.constant 0 : i32
    %c0_i32_1 = arith.constant 0 : i32
    return %c0_i32, %c0_i32_0 : i32, i32
  }
  func.func @transform_16(%arg0: i32) -> (i32, i32) {
    %c0_i32 = arith.constant 0 : i32
    %c0_i32_0 = arith.constant 0 : i32
    %c0_i32_1 = arith.constant 0 : i32
    return %c0_i32, %c0_i32_0 : i32, i32
  }
  func.func @transform_17(%arg0: i32) -> (i32, i32) {
    %c0_i32 = arith.constant 0 : i32
    %c0_i32_0 = arith.constant 0 : i32
    %c0_i32_1 = arith.constant 0 : i32
    return %c0_i32, %c0_i32_0 : i32, i32
  }
  func.func @transform_18(%arg0: i32) -> (i32, i32) {
    %c0_i32 = arith.constant 0 : i32
    %c0_i32_0 = arith.constant 0 : i32
    %c0_i32_1 = arith.constant 0 : i32
    return %c0_i32, %c0_i32_0 : i32, i32
  }
  func.func @transform_19(%arg0: i32) -> (i32, i32) {
    %c0_i32 = arith.constant 0 : i32
    %c0_i32_0 = arith.constant 0 : i32
    %c0_i32_1 = arith.constant 0 : i32
    return %c0_i32, %c0_i32_0 : i32, i32
  }
  func.func @transform_20(%arg0: i32) -> (i32, i32) {
    %c0_i32 = arith.constant 0 : i32
    %c0_i32_0 = arith.constant 0 : i32
    %c0_i32_1 = arith.constant 0 : i32
    return %c0_i32, %c0_i32_0 : i32, i32
  }
  func.func @transform_21(%arg0: i32) -> (i32, i32) {
    %c0_i32 = arith.constant 0 : i32
    %c0_i32_0 = arith.constant 0 : i32
    return %arg0, %c0_i32 : i32, i32
  }
  func.func @transform_22(%arg0: i32) -> (i32, i32) {
    %c0_i32 = arith.constant 0 : i32
    %c0_i32_0 = arith.constant 0 : i32
    return %arg0, %c0_i32 : i32, i32
  }
  func.func @transform_23(%arg0: i32) -> (i32, i32) {
    %c0_i32 = arith.constant 0 : i32
    %c0_i32_0 = arith.constant 0 : i32
    return %arg0, %c0_i32 : i32, i32
  }
}

</mosaic_0001>

<llo_original>
// kernel: tpu_custom_call.1
$region0: #{tpu_custom_call.1}
  #allocation0 [shape = 'u32[]', space=smem, size = 0x4, offset = 0x4, fixed_abs, tag = 'smem constant byte address 0x4 - core index']
  #allocation1 [shape = 'u32[72,128]{1,0:T(1,128)}', space=vmem, size = 0x9000, scoped, tag = 'internal scratch']
  #allocation2 [shape = 'f32[1]{0:T(128)S(6)}', space=smem, size = 0x200, scoped, tag = 'scoped memory for tpu_custom_call.1']
  %s0 = inlined_call_operand.<no memory space> [shape: f32[1], index: 0, kind: input, shape index: {}]
  %s1 = inlined_call_operand.vmem [shape: f32[16,8], index: 1, kind: input, shape index: {}]
  %s2 = inlined_call_operand.vmem [shape: f32[16,4], index: 2, kind: input, shape index: {}]
  %s3 = inlined_call_operand.vmem [shape: f32[16,4], index: 3, kind: input, shape index: {}]
  %s4 = inlined_call_operand.vmem [shape: f32[16,128], index: 4, kind: input, shape index: {}]
  %s5 = inlined_call_operand.vmem [shape: bf16[8,32], index: 5, kind: input, shape index: {}]
  %s6 = inlined_call_operand.vmem [shape: bf16[4,32], index: 6, kind: input, shape index: {}]
  %s7 = inlined_call_operand.vmem [shape: bf16[4,32], index: 7, kind: input, shape index: {}]
  %s8 = inlined_call_operand.vmem [shape: f32[1,32], index: 8, kind: input, shape index: {}]
  %s9 = inlined_call_operand.vmem [shape: bf16[32,32], index: 9, kind: input, shape index: {}]
  %s10 = inlined_call_operand.vmem [shape: f32[1,32], index: 10, kind: input, shape index: {}]
  %s11 = inlined_call_operand.vmem [shape: bf16[32,256], index: 11, kind: input, shape index: {}]
  %s12 = inlined_call_operand.vmem [shape: f32[1,256], index: 12, kind: input, shape index: {}]
  %s13 = inlined_call_operand.vmem [shape: bf16[8,32], index: 13, kind: input, shape index: {}]
  %s14 = inlined_call_operand.vmem [shape: bf16[128,32], index: 14, kind: input, shape index: {}]
  %s15 = inlined_call_operand.vmem [shape: bf16[4,32], index: 15, kind: input, shape index: {}]
  %s16 = inlined_call_operand.vmem [shape: f32[1,32], index: 16, kind: input, shape index: {}]
  %s17 = inlined_call_operand.vmem [shape: bf16[32,32], index: 17, kind: input, shape index: {}]
  %s18 = inlined_call_operand.vmem [shape: f32[1,32], index: 18, kind: input, shape index: {}]
  %s19 = inlined_call_operand.vmem [shape: bf16[32,128], index: 19, kind: input, shape index: {}]
  %s20 = inlined_call_operand.vmem [shape: f32[1,128], index: 20, kind: input, shape index: {}]
  %s21 = inlined_call_operand.hbm [shape: f32[16,128], index: 21, kind: output, shape index: {0}]
  %s22 = inlined_call_operand.hbm [shape: f32[16,128], index: 22, kind: output, shape index: {1}]
  %s23 = inlined_call_operand.hbm [shape: f32[16,128], index: 23, kind: output, shape index: {2}]
  %24 = xla_tuple %s21, %s22, %s23
  %s25 = sld [smem:[#allocation0]]
  $region110: #{tpu_custom_call.1} parent=0
    _
  %s27 = ssub.s32 1, %s25
  %s28 = scalar_select 0, %s27, %s25
  %29 = sst [smem:[#allocation2]] %s0
  $region1: #{tpu_custom_call.1} parent=0
    #allocation3 [shape = 'u8[8192]{0}', space=vmem, size = 0x2000, scoped, tag = 'output window, operand 0, single buffered']
    #allocation4 [shape = 's32[1]{0}', space=sflag, size = 0x4, scoped, tag = 'scoped memory for tpu_custom_call.1']
    #allocation5 [shape = 'u8[8192]{0}', space=vmem, size = 0x2000, scoped, tag = 'output window, operand 1, single buffered']
    #allocation6 [shape = 's32[1]{0}', space=sflag, size = 0x4, scoped, tag = 'scoped memory for tpu_custom_call.1']
    #allocation7 [shape = 'u8[8192]{0}', space=vmem, size = 0x2000, scoped, tag = 'output window, operand 2, single buffered']
    %30 = vsyncpa [#allocation4], 0
    %31 = vsyncpa [#allocation6], 0
    // Predicated region
    $region2: #{tpu_custom_call.1} parent=1 // pred_check
      _
    $region3: #{tpu_custom_call.1} parent=1 // pred_check_branch
      %33 = sbr.rel (0) target = $region5
    $region4: #{tpu_custom_call.1} parent=1 // pred_region
      _
    $region5: #{tpu_custom_call.1} parent=1 // pred_fallthru
      _
    // Predicated region
    $region6: #{tpu_custom_call.1} parent=1 // pred_check
      _
    $region7: #{tpu_custom_call.1} parent=1 // pred_check_branch
      %35 = sbr.rel (0) target = $region9
    $region8: #{tpu_custom_call.1} parent=1 // pred_region
      _
    $region9: #{tpu_custom_call.1} parent=1 // pred_fallthru
      _
    // Predicated region
    $region10: #{tpu_custom_call.1} parent=1 // pred_check
      _
    $region11: #{tpu_custom_call.1} parent=1 // pred_check_branch
      %37 = sbr.rel (0) target = $region13
    $region12: #{tpu_custom_call.1} parent=1 // pred_region
      _
    $region13: #{tpu_custom_call.1} parent=1 // pred_fallthru
      _
    // Predicated region
    $region14: #{tpu_custom_call.1} parent=1 // pred_check
      _
    $region15: #{tpu_custom_call.1} parent=1 // pred_check_branch
      %39 = sbr.rel (0) target = $region17
    $region16: #{tpu_custom_call.1} parent=1 // pred_region
      _
    $region17: #{tpu_custom_call.1} parent=1 // pred_fallthru
      _
    // Predicated region
    $region18: #{tpu_custom_call.1} parent=1 // pred_check
      _
    $region19: #{tpu_custom_call.1} parent=1 // pred_check_branch
      %41 = sbr.rel (0) target = $region21
    $region20: #{tpu_custom_call.1} parent=1 // pred_region
      _
    $region21: #{tpu_custom_call.1} parent=1 // pred_fallthru
      _
    // Predicated region
    $region22: #{tpu_custom_call.1} parent=1 // pred_check
      _
    $region23: #{tpu_custom_call.1} parent=1 // pred_check_branch
      %43 = sbr.rel (0) target = $region25
    $region24: #{tpu_custom_call.1} parent=1 // pred_region
      _
    $region25: #{tpu_custom_call.1} parent=1 // pred_fallthru
      _
    // Predicated region
    $region26: #{tpu_custom_call.1} parent=1 // pred_check
      _
    $region27: #{tpu_custom_call.1} parent=1 // pred_check_branch
      %45 = sbr.rel (0) target = $region29
    $region28: #{tpu_custom_call.1} parent=1 // pred_region
      _
    $region29: #{tpu_custom_call.1} parent=1 // pred_fallthru
      _
    // Predicated region
    $region30: #{tpu_custom_call.1} parent=1 // pred_check
      _
    $region31: #{tpu_custom_call.1} parent=1 // pred_check_branch
      %47 = sbr.rel (0) target = $region33
    $region32: #{tpu_custom_call.1} parent=1 // pred_region
      _
    $region33: #{tpu_custom_call.1} parent=1 // pred_fallthru
      _
    // Predicated region
    $region34: #{tpu_custom_call.1} parent=1 // pred_check
      _
    $region35: #{tpu_custom_call.1} parent=1 // pred_check_branch
      %49 = sbr.rel (0) target = $region37
    $region36: #{tpu_custom_call.1} parent=1 // pred_region
      _
    $region37: #{tpu_custom_call.1} parent=1 // pred_fallthru
      _
    // Predicated region
    $region38: #{tpu_custom_call.1} parent=1 // pred_check
      _
    $region39: #{tpu_custom_call.1} parent=1 // pred_check_branch
      %51 = sbr.rel (0) target = $region41
    $region40: #{tpu_custom_call.1} parent=1 // pred_region
      _
    $region41: #{tpu_custom_call.1} parent=1 // pred_fallthru
      _
    // Predicated region
    $region42: #{tpu_custom_call.1} parent=1 // pred_check
      _
    $region43: #{tpu_custom_call.1} parent=1 // pred_check_branch
      %53 = sbr.rel (0) target = $region45
    $region44: #{tpu_custom_call.1} parent=1 // pred_region
      _
    $region45: #{tpu_custom_call.1} parent=1 // pred_fallthru
      _
    // Predicated region
    $region46: #{tpu_custom_call.1} parent=1 // pred_check
      _
    $region47: #{tpu_custom_call.1} parent=1 // pred_check_branch
      %55 = sbr.rel (0) target = $region49
    $region48: #{tpu_custom_call.1} parent=1 // pred_region
      _
    $region49: #{tpu_custom_call.1} parent=1 // pred_fallthru
      _
    // Predicated region
    $region50: #{tpu_custom_call.1} parent=1 // pred_check
      _
    $region51: #{tpu_custom_call.1} parent=1 // pred_check_branch
      %57 = sbr.rel (0) target = $region53
    $region52: #{tpu_custom_call.1} parent=1 // pred_region
      _
    $region53: #{tpu_custom_call.1} parent=1 // pred_fallthru
      _
    // Predicated region
    $region54: #{tpu_custom_call.1} parent=1 // pred_check
      _
    $region55: #{tpu_custom_call.1} parent=1 // pred_check_branch
      %59 = sbr.rel (0) target = $region57
    $region56: #{tpu_custom_call.1} parent=1 // pred_region
      _
    $region57: #{tpu_custom_call.1} parent=1 // pred_fallthru
      _
    // Predicated region
    $region58: #{tpu_custom_call.1} parent=1 // pred_check
      _
    $region59: #{tpu_custom_call.1} parent=1 // pred_check_branch
      %61 = sbr.rel (0) target = $region61
    $region60: #{tpu_custom_call.1} parent=1 // pred_region
      _
    $region61: #{tpu_custom_call.1} parent=1 // pred_fallthru
      _
    // Predicated region
    $region62: #{tpu_custom_call.1} parent=1 // pred_check
      _
    $region63: #{tpu_custom_call.1} parent=1 // pred_check_branch
      %63 = sbr.rel (0) target = $region65
    $region64: #{tpu_custom_call.1} parent=1 // pred_region
      _
    $region65: #{tpu_custom_call.1} parent=1 // pred_fallthru
      _
    // Predicated region
    $region66: #{tpu_custom_call.1} parent=1 // pred_check
      _
    $region67: #{tpu_custom_call.1} parent=1 // pred_check_branch
      %65 = sbr.rel (0) target = $region69
    $region68: #{tpu_custom_call.1} parent=1 // pred_region
      _
    $region69: #{tpu_custom_call.1} parent=1 // pred_fallthru
      _
    // Predicated region
    $region70: #{tpu_custom_call.1} parent=1 // pred_check
      _
    $region71: #{tpu_custom_call.1} parent=1 // pred_check_branch
      %67 = sbr.rel (0) target = $region73
    $region72: #{tpu_custom_call.1} parent=1 // pred_region
      _
    $region73: #{tpu_custom_call.1} parent=1 // pred_fallthru
      _
    // Predicated region
    $region74: #{tpu_custom_call.1} parent=1 // pred_check
      _
    $region75: #{tpu_custom_call.1} parent=1 // pred_check_branch
      %69 = sbr.rel (0) target = $region77
    $region76: #{tpu_custom_call.1} parent=1 // pred_region
      _
    $region77: #{tpu_custom_call.1} parent=1 // pred_fallthru
      _
    // Predicated region
    $region78: #{tpu_custom_call.1} parent=1 // pred_check
      _
    $region79: #{tpu_custom_call.1} parent=1 // pred_check_branch
      %71 = sbr.rel (0) target = $region81
    $region80: #{tpu_custom_call.1} parent=1 // pred_region
      _
    $region81: #{tpu_custom_call.1} parent=1 // pred_fallthru
      _
    // Predicated region
    $region82: #{tpu_custom_call.1} parent=1 // pred_check
      _
    $region83: #{tpu_custom_call.1} parent=1 // pred_check_branch
      %73 = sbr.rel (0) target = $region85
    $region84: #{tpu_custom_call.1} parent=1 // pred_region
      _
    $region85: #{tpu_custom_call.1} parent=1 // pred_fallthru
      _
    %s75 = sld [smem:[#allocation2]]
    %v76 = vld [vmem:[%s1] sm:$0xff]
    %v77 = vld [vmem:[%s1 + $0x8] sm:$0xff]
    %v78 = vld [vmem:[%s3] sm:$0xff]
    %v79 = vld [vmem:[%s3 + $0x8] sm:$0xff]
    %v80 = vpack.c.bf16 %v77, %v76
    %v81 = vld [vmem:[%s5] sm:$0xf]
    %v82 = vld [vmem:[%s2] sm:$0xff]
    %v83 = vld [vmem:[%s2 + $0x8] sm:$0xff]
    %v84 = vpack.c.bf16 %v83, %v82
    %v85 = vld [vmem:[%s6] sm:$0x3]
    %vm86 = vcmask 31744
    %v88 = vsel %vm86, %v84, 0
    %vm90 = vcmask 1041408
    %v92 = vsel %vm90, %v85, 0
    %94 = vmatpush.bf16.msra.mxu0 0
    %95 = vmatpush.bf16.msra.mxu0 0
    %96 = vmatpush.bf16.msra.mxu0 0
    %97 = vmatpush.bf16.msra.mxu0 0
    %98 = vmatpush.bf16.msra.mxu0 0
    %99 = vmatpush.bf16.msra.mxu0 0
    %100 = vmatpush.bf16.msra.mxu0 0
    %101 = vmatpush.bf16.msra.mxu0 %v92
    %102 = vmatmul.bf16.gmra.mxu0 %v88
    %v103 = vpop.f32.mrf.mxu0
    %v104 = vadd.f32 0.0, %v103
    %v105 = vpop.f32.mrf.mxu0
    %v106 = vadd.f32 0.0, %v105
    %107 = vdwg.mxu0
    %vm108 = vcmask 64512
    %v110 = vsel %vm108, %v80, 0
    %vm112 = vcmask 1043456
    %v114 = vsel %vm112, %v81, 0
    %116 = vmatpush.bf16.msra.mxu0 0
    %117 = vmatpush.bf16.msra.mxu0 0
    %118 = vmatpush.bf16.msra.mxu0 0
    %119 = vmatpush.bf16.msra.mxu0 0
    %120 = vmatpush.bf16.msra.mxu0 0
    %121 = vmatpush.bf16.msra.mxu0 0
    %122 = vmatpush.bf16.msra.mxu0 0
    %123 = vmatpush.bf16.msra.mxu0 %v114
    %124 = vmatmul.bf16.gmra.mxu0 %v110
    %v125 = vpop.f32.mrf.mxu0
    %v126 = vadd.f32 %v104, %v125
    %v127 = vpop.f32.mrf.mxu0
    %v128 = vadd.f32 %v106, %v127
    %129 = vdwg.mxu0
    %v130 = vpack.c.bf16 %v79, %v78
    %v131 = vld [vmem:[%s7] sm:$0x3]
    %v133 = vsel %vm86, %v130, 0
    %v136 = vsel %vm90, %v131, 0
    %138 = vmatpush.bf16.msra.mxu0 0
    %139 = vmatpush.bf16.msra.mxu0 0
    %140 = vmatpush.bf16.msra.mxu0 0
    %141 = vmatpush.bf16.msra.mxu0 0
    %142 = vmatpush.bf16.msra.mxu0 0
    %143 = vmatpush.bf16.msra.mxu0 0
    %144 = vmatpush.bf16.msra.mxu0 0
    %145 = vmatpush.bf16.msra.mxu0 %v136
    %146 = vmatmul.bf16.gmra.mxu0 %v133
    %v147 = vpop.f32.mrf.mxu0
    %v148 = vadd.f32 0.0, %v147
    %v149 = vpop.f32.mrf.mxu0
    %v150 = vadd.f32 0.0, %v149
    %151 = vdwg.mxu0
    %v152 = vadd.f32 %v126, %v148
    %v153 = vadd.f32 %v128, %v150
    %v154 = vld [vmem:[%s8] sm:$0x1]
    %v156 = vperm.slane %v154, 0
    %v158 = vadd.f32 %v152, %v156
    %v159 = vadd.f32 %v153, %v156
    %v160 = vmax.f32 %v158, 0.0
    %v161 = vmax.f32 %v159, 0.0
    %v162 = vpack.c.bf16 %v161, %v160
    %v163 = vld [vmem:[%s9] sm:$0xf]
    %v164 = vld [vmem:[%s9 + $0x4] sm:$0xf]
    %v165 = vld [vmem:[%s9 + $0x8] sm:$0xf]
    %v166 = vld [vmem:[%s9 + $0xc] sm:$0xf]
    %v167 = vld [vmem:[%s10] sm:$0x1]
    %v169 = vperm.slane %v167, 0
    %v175 = vunpack.c.l.b16 %v163
    %v176 = vunpack.c.l.b16 %v164
    %v177 = vunpack.c.l.b16 %v165
    %v178 = vunpack.c.l.b16 %v166
    %v179 = vpack.c.b16 %v176, %v175
    %v180 = vpack.c.b16 %v178, %v177
    %vm183 = vcmask 261120
    %v185 = vsel %vm183, %v162, 0
    %187 = vmatpush.bf16.msra.mxu0 0
    %188 = vmatpush.bf16.msra.mxu0 0
    %189 = vmatpush.bf16.msra.mxu0 0
    %190 = vmatpush.bf16.msra.mxu0 0
    %191 = vmatpush.bf16.msra.mxu0 0
    %192 = vmatpush.bf16.msra.mxu0 0
    %193 = vmatpush.bf16.msra.mxu0 %v180
    %194 = vmatpush.bf16.msra.mxu0 %v179
    %195 = vmatmul.bf16.gmra.mxu0 %v185
    %v196 = vpop.f32.mrf.mxu0
    %v197 = vadd.f32 %v169, %v196
    %v198 = vpop.f32.mrf.mxu0
    %v199 = vadd.f32 %v169, %v198
    %200 = vdwg.mxu0
    %v201 = vmax.f32 %v197, 0.0
    %v202 = vmax.f32 %v199, 0.0
    %v203 = vpack.c.bf16 %v202, %v201
    %v204 = vld [vmem:[%s11] sm:$0xff]
    %v205 = vld [vmem:[%s11 + $0x8] sm:$0xff]
    %v206 = vld [vmem:[%s11 + $0x10] sm:$0xff]
    %v207 = vld [vmem:[%s11 + $0x18] sm:$0xff]
    %v208 = vld [vmem:[%s12] sm:$0x3]
    %v210 = vperm.slane %v208, 0
    %v211 = vperm.slane %v208, 1
    %v218 = vunpack.c.l.b16 %v204
    %v219 = vunpack.c.h.b16 %v204
    %v220 = vunpack.c.l.b16 %v205
    %v221 = vunpack.c.h.b16 %v205
    %v222 = vunpack.c.l.b16 %v206
    %v223 = vunpack.c.h.b16 %v206
    %v224 = vunpack.c.l.b16 %v207
    %v225 = vunpack.c.h.b16 %v207
    %v226 = vpack.c.b16 %v220, %v218
    %v227 = vpack.c.b16 %v221, %v219
    %v228 = vpack.c.b16 %v224, %v222
    %v229 = vpack.c.b16 %v225, %v223
    %v235 = vsel %vm183, %v203, 0
    %237 = vmatpush.bf16.msra.mxu0 0
    %238 = vmatpush.bf16.msra.mxu0 0
    %239 = vmatpush.bf16.msra.mxu0 0
    %240 = vmatpush.bf16.msra.mxu0 0
    %241 = vmatpush.bf16.msra.mxu0 0
    %242 = vmatpush.bf16.msra.mxu0 0
    %243 = vmatpush.bf16.msra.mxu0 %v228
    %244 = vmatpush.bf16.msra.mxu0 %v226
    %245 = vmatmul.bf16.gmra.mxu0 %v235
    %v246 = vpop.f32.mrf.mxu0
    %v247 = vadd.f32 %v210, %v246
    %v248 = vpop.f32.mrf.mxu0
    %v249 = vadd.f32 %v210, %v248
    %250 = vdwg.mxu0
    %251 = vmatpush.bf16.msra.mxu0 0
    %252 = vmatpush.bf16.msra.mxu0 0
    %253 = vmatpush.bf16.msra.mxu0 0
    %254 = vmatpush.bf16.msra.mxu0 0
    %255 = vmatpush.bf16.msra.mxu0 0
    %256 = vmatpush.bf16.msra.mxu0 0
    %257 = vmatpush.bf16.msra.mxu0 %v229
    %258 = vmatpush.bf16.msra.mxu0 %v227
    %259 = vmatmul.bf16.gmra.mxu0 %v235
    %v260 = vpop.f32.mrf.mxu0
    %v261 = vadd.f32 %v211, %v260
    %v262 = vpop.f32.mrf.mxu0
    %v263 = vadd.f32 %v211, %v262
    %264 = vdwg.mxu0
    %v265 = vmax.f32 %v261, -4.0
    %v266 = vmax.f32 %v263, -4.0
    %v267 = vmin.f32 %v265, 15.0
    %v268 = vmin.f32 %v266, 15.0
    %v269 = vmul.f32 %v267, 1.442695
    %v270 = vpow.pop %v269
    %v271 = vmul.f32 %v268, 1.442695
    %v272 = vpow.pop %v271
    %v273 = vld [vmem:[%s4] sm:$0xff]
    %v274 = vld [vmem:[%s4 + $0x8] sm:$0xff]
    %v275 = vmul.f32 %v270, %v273
    %v276 = vmul.f32 %v272, %v274
    %v277 = vadd.f32 %v247, %v275
    %v278 = vadd.f32 %v249, %v276
    %v279 = vld [vmem:[%s13] sm:$0xf]
    %v280 = vpack.c.bf16 %v278, %v277
    %v281 = vld [vmem:[%s14] sm:$0xf]
    %v282 = vld [vmem:[%s14 + $0x4] sm:$0xf]
    %v283 = vld [vmem:[%s14 + $0x8] sm:$0xf]
    %v284 = vld [vmem:[%s14 + $0xc] sm:$0xf]
    %v285 = vld [vmem:[%s14 + $0x10] sm:$0xf]
    %v286 = vld [vmem:[%s14 + $0x14] sm:$0xf]
    %v287 = vld [vmem:[%s14 + $0x18] sm:$0xf]
    %v288 = vld [vmem:[%s14 + $0x1c] sm:$0xf]
    %v289 = vld [vmem:[%s14 + $0x20] sm:$0xf]
    %v290 = vld [vmem:[%s14 + $0x24] sm:$0xf]
    %v291 = vld [vmem:[%s14 + $0x28] sm:$0xf]
    %v292 = vld [vmem:[%s14 + $0x2c] sm:$0xf]
    %v293 = vld [vmem:[%s14 + $0x30] sm:$0xf]
    %v294 = vld [vmem:[%s14 + $0x34] sm:$0xf]
    %v295 = vld [vmem:[%s14 + $0x38] sm:$0xf]
    %v296 = vld [vmem:[%s14 + $0x3c] sm:$0xf]
    %v313 = vunpack.c.l.b16 %v281
    %v314 = vunpack.c.l.b16 %v282
    %v315 = vunpack.c.l.b16 %v283
    %v316 = vunpack.c.l.b16 %v284
    %v317 = vunpack.c.l.b16 %v285
    %v318 = vunpack.c.l.b16 %v286
    %v319 = vunpack.c.l.b16 %v287
    %v320 = vunpack.c.l.b16 %v288
    %v321 = vunpack.c.l.b16 %v289
    %v322 = vunpack.c.l.b16 %v290
    %v323 = vunpack.c.l.b16 %v291
    %v324 = vunpack.c.l.b16 %v292
    %v325 = vunpack.c.l.b16 %v293
    %v326 = vunpack.c.l.b16 %v294
    %v327 = vunpack.c.l.b16 %v295
    %v328 = vunpack.c.l.b16 %v296
    %v329 = vpack.c.b16 %v314, %v313
    %v330 = vpack.c.b16 %v316, %v315
    %v331 = vpack.c.b16 %v318, %v317
    %v332 = vpack.c.b16 %v320, %v319
    %v333 = vpack.c.b16 %v322, %v321
    %v334 = vpack.c.b16 %v324, %v323
    %v335 = vpack.c.b16 %v326, %v325
    %v336 = vpack.c.b16 %v328, %v327
    %345 = vmatpush.bf16.msra.mxu0 %v336
    %346 = vmatpush.bf16.msra.mxu0 %v335
    %347 = vmatpush.bf16.msra.mxu0 %v334
    %348 = vmatpush.bf16.msra.mxu0 %v333
    %349 = vmatpush.bf16.msra.mxu0 %v332
    %350 = vmatpush.bf16.msra.mxu0 %v331
    %351 = vmatpush.bf16.msra.mxu0 %v330
    %352 = vmatpush.bf16.msra.mxu0 %v329
    %353 = vmatmul.bf16.gmra.mxu0 %v280
    %v354 = vpop.f32.mrf.mxu0
    %v355 = vadd.f32 0.0, %v354
    %v356 = vpop.f32.mrf.mxu0
    %v357 = vadd.f32 0.0, %v356
    %358 = vdwg.mxu0
    %v360 = vsel %vm112, %v279, 0
    %362 = vmatpush.bf16.msra.mxu0 0
    %363 = vmatpush.bf16.msra.mxu0 0
    %364 = vmatpush.bf16.msra.mxu0 0
    %365 = vmatpush.bf16.msra.mxu0 0
    %366 = vmatpush.bf16.msra.mxu0 0
    %367 = vmatpush.bf16.msra.mxu0 0
    %368 = vmatpush.bf16.msra.mxu0 0
    %369 = vmatpush.bf16.msra.mxu0 %v360
    %370 = vmatmul.bf16.gmra.mxu0 %v110
    %v371 = vpop.f32.mrf.mxu0
    %v372 = vadd.f32 %v355, %v371
    %v373 = vpop.f32.mrf.mxu0
    %v374 = vadd.f32 %v357, %v373
    %375 = vdwg.mxu0
    %v376 = vld [vmem:[%s15] sm:$0x3]
    %v378 = vsel %vm90, %v376, 0
    %380 = vmatpush.bf16.msra.mxu0 0
    %381 = vmatpush.bf16.msra.mxu0 0
    %382 = vmatpush.bf16.msra.mxu0 0
    %383 = vmatpush.bf16.msra.mxu0 0
    %384 = vmatpush.bf16.msra.mxu0 0
    %385 = vmatpush.bf16.msra.mxu0 0
    %386 = vmatpush.bf16.msra.mxu0 0
    %387 = vmatpush.bf16.msra.mxu0 %v378
    %388 = vmatmul.bf16.gmra.mxu0 %v133
    %v389 = vpop.f32.mrf.mxu0
    %v390 = vadd.f32 0.0, %v389
    %v391 = vpop.f32.mrf.mxu0
    %v392 = vadd.f32 0.0, %v391
    %393 = vdwg.mxu0
    %v394 = vadd.f32 %v372, %v390
    %v395 = vadd.f32 %v374, %v392
    %v396 = vld [vmem:[%s16] sm:$0x1]
    %v398 = vperm.slane %v396, 0
    %v400 = vadd.f32 %v394, %v398
    %v401 = vadd.f32 %v395, %v398
    %v402 = vmax.f32 %v400, 0.0
    %v403 = vmax.f32 %v401, 0.0
    %v404 = vpack.c.bf16 %v403, %v402
    %v405 = vld [vmem:[%s17] sm:$0xf]
    %v406 = vld [vmem:[%s17 + $0x4] sm:$0xf]
    %v407 = vld [vmem:[%s17 + $0x8] sm:$0xf]
    %v408 = vld [vmem:[%s17 + $0xc] sm:$0xf]
    %v409 = vld [vmem:[%s18] sm:$0x1]
    %v411 = vperm.slane %v409, 0
    %v417 = vunpack.c.l.b16 %v405
    %v418 = vunpack.c.l.b16 %v406
    %v419 = vunpack.c.l.b16 %v407
    %v420 = vunpack.c.l.b16 %v408
    %v421 = vpack.c.b16 %v418, %v417
    %v422 = vpack.c.b16 %v420, %v419
    %v426 = vsel %vm183, %v404, 0
    %428 = vmatpush.bf16.msra.mxu0 0
    %429 = vmatpush.bf16.msra.mxu0 0
    %430 = vmatpush.bf16.msra.mxu0 0
    %431 = vmatpush.bf16.msra.mxu0 0
    %432 = vmatpush.bf16.msra.mxu0 0
    %433 = vmatpush.bf16.msra.mxu0 0
    %434 = vmatpush.bf16.msra.mxu0 %v422
    %435 = vmatpush.bf16.msra.mxu0 %v421
    %436 = vmatmul.bf16.gmra.mxu0 %v426
    %v437 = vpop.f32.mrf.mxu0
    %v438 = vadd.f32 %v411, %v437
    %v439 = vpop.f32.mrf.mxu0
    %v440 = vadd.f32 %v411, %v439
    %441 = vdwg.mxu0
    %v442 = vmax.f32 %v438, 0.0
    %v443 = vmax.f32 %v440, 0.0
    %v444 = vpack.c.bf16 %v443, %v442
    %v445 = vld [vmem:[%s19] sm:$0xf]
    %v446 = vld [vmem:[%s19 + $0x4] sm:$0xf]
    %v447 = vld [vmem:[%s19 + $0x8] sm:$0xf]
    %v448 = vld [vmem:[%s19 + $0xc] sm:$0xf]
    %v449 = vld [vmem:[%s20] sm:$0x1]
    %v451 = vperm.slane %v449, 0
    %v457 = vunpack.c.l.b16 %v445
    %v458 = vunpack.c.l.b16 %v446
    %v459 = vunpack.c.l.b16 %v447
    %v460 = vunpack.c.l.b16 %v448
    %v461 = vpack.c.b16 %v458, %v457
    %v462 = vpack.c.b16 %v460, %v459
    %v466 = vsel %vm183, %v444, 0
    %468 = vmatpush.bf16.msra.mxu0 0
    %469 = vmatpush.bf16.msra.mxu0 0
    %470 = vmatpush.bf16.msra.mxu0 0
    %471 = vmatpush.bf16.msra.mxu0 0
    %472 = vmatpush.bf16.msra.mxu0 0
    %473 = vmatpush.bf16.msra.mxu0 0
    %474 = vmatpush.bf16.msra.mxu0 %v462
    %475 = vmatpush.bf16.msra.mxu0 %v461
    %476 = vmatmul.bf16.gmra.mxu0 %v466
    %v477 = vpop.f32.mrf.mxu0
    %v478 = vadd.f32 %v451, %v477
    %v479 = vpop.f32.mrf.mxu0
    %v480 = vadd.f32 %v451, %v479
    %481 = vdwg.mxu0
    %v482 = vtanh.pop %v478
    %v483 = vtanh.pop %v480
    %v484 = vstv %s75
    %v485 = vmul.f32 %v484, %v482
    %v486 = vmul.f32 %v484, %v483
    %487 = vst [vmem:[#allocation3] sm:$0xff] %v485
    %488 = vst [vmem:[#allocation3 + $0x8] sm:$0xff] %v486
    %489 = vst [vmem:[#allocation5] sm:$0xff] %v247
    %490 = vst [vmem:[#allocation5 + $0x8] sm:$0xff] %v249
    %491 = vst [vmem:[#allocation7] sm:$0xff] %v270
    %492 = vst [vmem:[#allocation7 + $0x8] sm:$0xff] %v272
    // Predicated region
    $region86: #{tpu_custom_call.1} parent=1 // pred_check
      _
    $region87: #{tpu_custom_call.1} parent=1 // pred_check_branch
      %494 = sbr.rel (0) target = $region89
    $region88: #{tpu_custom_call.1} parent=1 // pred_region
      %496 = vsyncadd [#allocation4], 0
      %s497 = sshll.u32 [#allocation3], 4
      %s498 = int_to_ptr.vmem [resolvable:$true] %s497
      %s499 = sshll.u32 %s21, 4
      %s500 = int_to_ptr.hbm [resolvable:$true] %s499
      %505 = dma.vmem_to_hbm [thread:$0]  %s498, 256, %s500, [#allocation4], 128, 128, 8
    $region89: #{tpu_custom_call.1} parent=1 // pred_fallthru
      _
    // Predicated region
    $region90: #{tpu_custom_call.1} parent=1 // pred_check
      _
    $region91: #{tpu_custom_call.1} parent=1 // pred_check_branch
      %507 = sbr.rel (0) target = $region93
    $region92: #{tpu_custom_call.1} parent=1 // pred_region
      %509 = vsyncadd [#allocation6], 0
      %s510 = sshll.u32 [#allocation5], 4
      %s511 = int_to_ptr.vmem [resolvable:$true] %s510
      %s512 = sshll.u32 %s22, 4
      %s513 = int_to_ptr.hbm [resolvable:$true] %s512
      %518 = dma.vmem_to_hbm [thread:$0]  %s511, 256, %s513, [#allocation6], 128, 128, 8
    $region93: #{tpu_custom_call.1} parent=1 // pred_fallthru
      _
    // Predicated region
    $region94: #{tpu_custom_call.1} parent=1 // pred_check
      _
    $region95: #{tpu_custom_call.1} parent=1 // pred_check_branch
      %520 = sbr.rel (0) target = $region97
    $region96: #{tpu_custom_call.1} parent=1 // pred_region
      %522 = vsyncadd [#allocation6], 0
      %s523 = sshll.u32 [#allocation7], 4
      %s524 = int_to_ptr.vmem [resolvable:$true] %s523
      %s525 = sshll.u32 %s23, 4
      %s526 = int_to_ptr.hbm [resolvable:$true] %s525
      %531 = dma.vmem_to_hbm [thread:$0]  %s524, 256, %s526, [#allocation6], 128, 128, 8
    $region97: #{tpu_custom_call.1} parent=1 // pred_fallthru
      _
    // Predicated region
    $region98: #{tpu_custom_call.1} parent=1 // pred_check
      _
    $region99: #{tpu_custom_call.1} parent=1 // pred_check_branch
      %533 = sbr.rel (0) target = $region101
    $region100: #{tpu_custom_call.1} parent=1 // pred_region
      %535 = dma.done [#allocation4], 256
    $region101: #{tpu_custom_call.1} parent=1 // pred_fallthru
      _
    // Predicated region
    $region102: #{tpu_custom_call.1} parent=1 // pred_check
      _
    $region103: #{tpu_custom_call.1} parent=1 // pred_check_branch
      %537 = sbr.rel (0) target = $region105
    $region104: #{tpu_custom_call.1} parent=1 // pred_region
      %539 = dma.done [#allocation6], 256
    $region105: #{tpu_custom_call.1} parent=1 // pred_fallthru
      _
    // Predicated region
    $region106: #{tpu_custom_call.1} parent=1 // pred_check
      _
    $region107: #{tpu_custom_call.1} parent=1 // pred_check_branch
      %541 = sbr.rel (0) target = $region109
    $region108: #{tpu_custom_call.1} parent=1 // pred_region
      %543 = dma.done [#allocation6], 256
    $region109: #{tpu_custom_call.1} parent=1 // pred_fallthru
      _
    %544 = vsyncpa [#allocation4], 1
    %545 = vsyncpa [#allocation6], 1

</llo_original>
